<compile_context>
chip_gen: v6e
topology: v6e:2x2x1
jax: 0.10.0
libtpu: 0.0.40
codegen_flags: <defaults>
</compile_context>

<pallas_src>
import jax
import jax.numpy as jnp
from jax.experimental import pallas as pl
from jax.experimental.pallas import tpu as pltpu

# ---- module hyper-parameters (defaults of the PyTorch module) ----
IMG = 28
PATCH = 7
IN_CH = 1
EMBED = 64
BATCH = 2


def patch_embed_kernel(x_ref, w_ref, b_ref, o_ref):
    # x_ref: (B*Hp, P*W_img)  raw image rows (contiguous view of the input)
    # w_ref: (P*W_img, Wp*E)  projection weight with im2col folded in (cached)
    # b_ref: (1, Wp*E)        bias tiled per patch column (cached)
    # o_ref: (B*Hp, Wp*E)     lane-dense output (last dim = 256, unmasked vst)
    o_ref[...] = (
        jnp.dot(x_ref[...], w_ref[...], preferred_element_type=jnp.float32)
        + b_ref[...]
    ).astype(o_ref.dtype)


def make_patch_embedding(weight, bias, *, img_size=IMG, patch_size=PATCH,
                         in_channels=IN_CH):
    """Builds the folded projection ONCE and returns a jitted forward(x).

    weight: (E, P*P) in torch nn.Linear layout; bias: (E,).
    forward(x): x (B, 1, H, W) f32 -> (B, n_patches, E), matching
    torch PatchEmbedding.forward(x).
    """
    # TODO(synk): in_channels > 1 (torch's channel-interleaved unfold+view flatten)
    # is not implemented; the module default is in_channels=1.
    assert in_channels == 1, "kernel implements the in_channels=1 default"
    P = patch_size
    Wimg = img_size
    Wp = Wimg // P
    E = weight.shape[0]

    # ---- one-time weight folding (perf fix: hoisted out of the per-call path) ----
    #   w_big[ph*Wimg + wp*P + pw, wp*E + e] = weight[e, ph*P + pw]
    w_t = weight.T.reshape(P, P, E)                    # [ph, pw, e]
    eye = jnp.eye(Wp, dtype=weight.dtype)              # [wp_row, wp_col]
    w_big = (w_t[:, None, :, None, :] * eye[None, :, None, :, None]).reshape(
        P * Wimg, Wp * E
    )
    b_big = jnp.tile(bias, (Wp,)).reshape(1, Wp * E)
    # Materialize the cached constants now (device-resident; reused every call).
    w_big, b_big = jax.block_until_ready((w_big, b_big))

    @jax.jit
    def forward(x):
        B, C, H, Wimg_ = x.shape
        Hp = H // P
        # Contiguous (free) view: row = (b, hp), col = ph*Wimg + wp*P + pw.
        x_mat = x.reshape(B * Hp, P * Wimg_)
        out_flat = pl.pallas_call(
            patch_embed_kernel,
            out_shape=jax.ShapeDtypeStruct((B * Hp, Wp * E), x.dtype),
            in_specs=[
                pl.BlockSpec(memory_space=pltpu.MemorySpace.VMEM),
                pl.BlockSpec(memory_space=pltpu.MemorySpace.VMEM),
                pl.BlockSpec(memory_space=pltpu.MemorySpace.VMEM),
            ],
            out_specs=pl.BlockSpec(memory_space=pltpu.MemorySpace.VMEM),
        )(x_mat, w_big, b_big)
        # (B*Hp, Wp*E) -> (B, Hp, Wp, E) -> (B, Hp*Wp, E); contiguous (free) reshapes.
        return out_flat.reshape(B, Hp, Wp, E).reshape(B, Hp * Wp, E)

    return forward


# ---------------- pure-JAX reference (faithful to the torch forward) ----------
def reference(x, weight, bias, *, patch_size=PATCH):
    B, C, H, Wimg = x.shape
    P = patch_size
    Hp, Wp = H // P, Wimg // P
    # x.unfold(2,P,P).unfold(3,P,P).contiguous().view(B, -1, C*P*P)
    patches = (
        x.reshape(B, C, Hp, P, Wp, P)
        .transpose(0, 1, 2, 4, 3, 5)
        .reshape(B, -1, C * P * P)
    )
    return jnp.dot(patches, weight.T, precision=jax.lax.Precision.HIGHEST) + bias


if __name__ == "__main__":
    key = jax.random.PRNGKey(0)
    kx, kw, kb = jax.random.split(key, 3)
    x = jax.random.normal(kx, (BATCH, IN_CH, IMG, IMG), jnp.float32)
    patch_dim = IN_CH * PATCH * PATCH
    weight = 0.02 * jax.random.normal(kw, (EMBED, patch_dim), jnp.float32)
    bias = 0.02 * jax.random.normal(kb, (EMBED,), jnp.float32)

    # Build once (folds + caches W_big / b_big), call many times cheaply.
    patch_embed = make_patch_embedding(
        weight, bias, img_size=IMG, patch_size=PATCH, in_channels=IN_CH
    )

    out = patch_embed(x)
    jax.block_until_ready(out)
    # Second call exercises the cached-constant fast path (no weight rebuild).
    out = patch_embed(x)
    jax.block_until_ready(out)

    ref = reference(x, weight, bias)
    assert out.shape == (BATCH, (IMG // PATCH) ** 2, EMBED), out.shape
    assert jnp.allclose(out, ref, rtol=1e-3, atol=1e-5), float(
        jnp.max(jnp.abs(out - ref))
    )

    print("KERNEL_OK")
</pallas_src>

<mosaic_0001>
module attributes {stable_mosaic.version = 11 : i64} {
  func.func @patch_embed_kernel(%arg0: memref<8x196xf32, #tpu.memory_space<vmem>>, %arg1: memref<196x256xf32, #tpu.memory_space<vmem>>, %arg2: memref<1x256xf32, #tpu.memory_space<vmem>>, %arg3: memref<8x256xf32, #tpu.memory_space<vmem>>) attributes {dimension_semantics = [], scalar_prefetch = 0 : i64, scratch_operands = 0 : i64, tpu.core_type = #tpu.core_type<tc>} {
    %c0 = arith.constant 0 : index
    %c0_0 = arith.constant 0 : index
    %0 = vector.load %arg0[%c0, %c0_0] : memref<8x196xf32, #tpu.memory_space<vmem>>, vector<8x196xf32>
    %c0_1 = arith.constant 0 : index
    %c0_2 = arith.constant 0 : index
    %1 = vector.load %arg1[%c0_1, %c0_2] : memref<196x256xf32, #tpu.memory_space<vmem>>, vector<196x256xf32>
    %cst = arith.constant dense<0.000000e+00> : vector<8x256xf32>
    %2 = tpu.matmul %0, %1, %cst {dimension_numbers = #tpu.dot_dimension_numbers<[1], [0], [0], [1], [0, 0, 1, 1], [], []>} : vector<8x196xf32>, vector<196x256xf32>, vector<8x256xf32> -> vector<8x256xf32>
    %c0_3 = arith.constant 0 : index
    %c0_4 = arith.constant 0 : index
    %3 = vector.load %arg2[%c0_3, %c0_4] : memref<1x256xf32, #tpu.memory_space<vmem>>, vector<1x256xf32>
    %4 = vector.broadcast %3 : vector<1x256xf32> to vector<8x256xf32>
    %5 = arith.addf %2, %4 : vector<8x256xf32>
    %c0_5 = arith.constant 0 : index
    %c0_6 = arith.constant 0 : index
    %6 = vector.load %arg3[%c0_5, %c0_6] : memref<8x256xf32, #tpu.memory_space<vmem>>, vector<8x256xf32>
    tpu.vector_store %arg3[%c0_5, %c0_6], %5 {strides = array<i32>} : memref<8x256xf32, #tpu.memory_space<vmem>>, vector<8x256xf32>,
    return
  }
}

</mosaic_0001>

<llo_original>
// kernel: forward.1
$region0: #{forward.1}
  #allocation0 [shape = 'u32[]', space=smem, size = 0x4, offset = 0x4, fixed_abs, tag = 'smem constant byte address 0x4 - core index']
  #allocation1 [shape = 'u32[144,128]{1,0:T(1,128)}', space=vmem, size = 0x12000, scoped, tag = 'internal scratch']
  %s0 = inlined_call_operand.vmem [shape: f32[8,196], index: 0, kind: input, shape index: {}]
  %s1 = inlined_call_operand.hbm [shape: f32[196,256], index: 1, kind: input, shape index: {}]
  %s2 = inlined_call_operand.vmem [shape: f32[1,256], index: 2, kind: input, shape index: {}]
  %s3 = inlined_call_operand.vmem [shape: f32[8,256], index: 3, kind: output, shape index: {}]
  %s4 = sld [smem:[#allocation0]]
  $region26: #{forward.1} parent=0
    _
  %s6 = ssub.s32 1, %s4
  %s7 = scalar_select 0, %s6, %s4
  $region1: #{forward.1} parent=0
    #allocation2 [shape = 'u8[204800]{0}', space=vmem, size = 0x32000, scoped, tag = 'input window, operand 1, single buffered']
    #allocation3 [shape = 's32[1]{0}', space=sflag, size = 0x4, scoped, tag = 'scoped memory for forward.1']
    %8 = vsyncpa [#allocation3], 0
    // Predicated region
    $region2: #{forward.1} parent=1 // pred_check
      _
    $region3: #{forward.1} parent=1 // pred_check_branch
      %10 = sbr.rel (0) target = $region5
    $region4: #{forward.1} parent=1 // pred_region
      _
    $region5: #{forward.1} parent=1 // pred_fallthru
      _
    // Predicated region
    $region6: #{forward.1} parent=1 // pred_check
      _
    $region7: #{forward.1} parent=1 // pred_check_branch
      %12 = sbr.rel (0) target = $region9
    $region8: #{forward.1} parent=1 // pred_region
      %s14 = ssub.s32 6400, 6400
      %15 = vsyncadd [#allocation3], %s14
      %s16 = sshll.u32 [#allocation2], 4
      %s17 = int_to_ptr.vmem [resolvable:$true] %s16
      %22 = dma.hbm_to_vmem [thread:$0]  %s1, 6400, %s17, [#allocation3], 256, 256, 16
    $region9: #{forward.1} parent=1 // pred_fallthru
      _
    // Predicated region
    $region10: #{forward.1} parent=1 // pred_check
      _
    $region11: #{forward.1} parent=1 // pred_check_branch
      %24 = sbr.rel (0) target = $region13
    $region12: #{forward.1} parent=1 // pred_region
      _
    $region13: #{forward.1} parent=1 // pred_fallthru
      _
    // Predicated region
    $region14: #{forward.1} parent=1 // pred_check
      _
    $region15: #{forward.1} parent=1 // pred_check_branch
      %26 = sbr.rel (0) target = $region17
    $region16: #{forward.1} parent=1 // pred_region
      %27 = dma.done [#allocation3], 6400
    $region17: #{forward.1} parent=1 // pred_fallthru
      _
    %v28 = vld [vmem:[%s0] sm:$0xff]
    %v29 = vld [vmem:[%s0 + $0x8] sm:$0xff]
    %v30 = vld [vmem:[#allocation2] sm:$0xff]
    %v31 = vld [vmem:[#allocation2 + $0x8] sm:$0xff]
    %v32 = vld [vmem:[#allocation2 + $0x10] sm:$0xff]
    %v33 = vld [vmem:[#allocation2 + $0x18] sm:$0xff]
    %v34 = vld [vmem:[#allocation2 + $0x20] sm:$0xff]
    %v35 = vld [vmem:[#allocation2 + $0x28] sm:$0xff]
    %v36 = vld [vmem:[#allocation2 + $0x30] sm:$0xff]
    %v37 = vld [vmem:[#allocation2 + $0x38] sm:$0xff]
    %v38 = vld [vmem:[#allocation2 + $0x40] sm:$0xff]
    %v39 = vld [vmem:[#allocation2 + $0x48] sm:$0xff]
    %v40 = vld [vmem:[#allocation2 + $0x50] sm:$0xff]
    %v41 = vld [vmem:[#allocation2 + $0x58] sm:$0xff]
    %v42 = vld [vmem:[#allocation2 + $0x60] sm:$0xff]
    %v43 = vld [vmem:[#allocation2 + $0x68] sm:$0xff]
    %v44 = vld [vmem:[#allocation2 + $0x70] sm:$0xff]
    %v45 = vld [vmem:[#allocation2 + $0x78] sm:$0xff]
    %v46 = vld [vmem:[#allocation2 + $0x80] sm:$0xff]
    %v47 = vld [vmem:[#allocation2 + $0x88] sm:$0xff]
    %v48 = vld [vmem:[#allocation2 + $0x90] sm:$0xff]
    %v49 = vld [vmem:[#allocation2 + $0x98] sm:$0xff]
    %v50 = vld [vmem:[#allocation2 + $0xa0] sm:$0xff]
    %v51 = vld [vmem:[#allocation2 + $0xa8] sm:$0xff]
    %v52 = vld [vmem:[#allocation2 + $0xb0] sm:$0xff]
    %v53 = vld [vmem:[#allocation2 + $0xb8] sm:$0xff]
    %v54 = vld [vmem:[#allocation2 + $0xc0] sm:$0xff]
    %v55 = vld [vmem:[#allocation2 + $0xc8] sm:$0xff]
    %v56 = vld [vmem:[#allocation2 + $0xd0] sm:$0xff]
    %v57 = vld [vmem:[#allocation2 + $0xd8] sm:$0xff]
    %v58 = vld [vmem:[#allocation2 + $0xe0] sm:$0xff]
    %v59 = vld [vmem:[#allocation2 + $0xe8] sm:$0xff]
    %v60 = vld [vmem:[#allocation2 + $0xf0] sm:$0xff]
    %v61 = vld [vmem:[#allocation2 + $0xf8] sm:$0xff]
    %v62 = vld [vmem:[#allocation2 + $0x100] sm:$0xff]
    %v63 = vld [vmem:[#allocation2 + $0x108] sm:$0xff]
    %v64 = vld [vmem:[#allocation2 + $0x110] sm:$0xff]
    %v65 = vld [vmem:[#allocation2 + $0x118] sm:$0xff]
    %v66 = vld [vmem:[#allocation2 + $0x120] sm:$0xff]
    %v67 = vld [vmem:[#allocation2 + $0x128] sm:$0xff]
    %v68 = vld [vmem:[#allocation2 + $0x130] sm:$0xff]
    %v69 = vld [vmem:[#allocation2 + $0x138] sm:$0xff]
    %v70 = vld [vmem:[#allocation2 + $0x140] sm:$0xff]
    %v71 = vld [vmem:[#allocation2 + $0x148] sm:$0xff]
    %v72 = vld [vmem:[#allocation2 + $0x150] sm:$0xff]
    %v73 = vld [vmem:[#allocation2 + $0x158] sm:$0xff]
    %v74 = vld [vmem:[#allocation2 + $0x160] sm:$0xff]
    %v75 = vld [vmem:[#allocation2 + $0x168] sm:$0xff]
    %v76 = vld [vmem:[#allocation2 + $0x170] sm:$0xff]
    %v77 = vld [vmem:[#allocation2 + $0x178] sm:$0xff]
    %v78 = vld [vmem:[#allocation2 + $0x180] sm:$0xf]
    %v79 = vld [vmem:[#allocation2 + $0x188] sm:$0xf]
    %v80 = vld [vmem:[%s2] sm:$0x3]
    %v82 = vlaneseq
    %v83 = vshrl.u32 %v82, 7
    %v84 = vsub.s32 0, %v83
    %v85 = vrot.slane %v80, %v84
    %v86 = vlaneseq
    %v87 = vshrl.u32 %v86, 7
    %v88 = vsub.s32 1, %v87
    %v89 = vrot.slane %v80, %v88
    %vm92 = vcmask 556032
    %v94 = vsel %vm92, %v29, 0
    %vm96 = vcmask 1043456
    %v98 = vsel %vm96, %v78, 0
    %v101 = vsel %vm96, %v79, 0
    %103 = vmatprep.subr.mxu0 %v61
    %104 = vmatpush1.msra.mxu0 %v60
    %105 = vmatprep.subr.mxu0 %v59
    %106 = vmatpush1.msra.mxu0 %v58
    %107 = vmatprep.subr.mxu0 %v57
    %108 = vmatpush1.msra.mxu0 %v56
    %109 = vmatprep.subr.mxu0 %v55
    %110 = vmatpush1.msra.mxu0 %v54
    %111 = vmatprep.subr.mxu0 %v53
    %112 = vmatpush1.msra.mxu0 %v52
    %113 = vmatprep.subr.mxu0 %v51
    %114 = vmatpush1.msra.mxu0 %v50
    %115 = vmatprep.subr.mxu0 %v49
    %116 = vmatpush1.msra.mxu0 %v48
    %117 = vmatprep.subr.mxu0 %v47
    %118 = vmatpush1.msra.mxu0 %v46
    %119 = vmatprep.subr.mxu0 %v45
    %120 = vmatpush1.msra.mxu0 %v44
    %121 = vmatprep.subr.mxu0 %v43
    %122 = vmatpush1.msra.mxu0 %v42
    %123 = vmatprep.subr.mxu0 %v41
    %124 = vmatpush1.msra.mxu0 %v40
    %125 = vmatprep.subr.mxu0 %v39
    %126 = vmatpush1.msra.mxu0 %v38
    %127 = vmatprep.subr.mxu0 %v37
    %128 = vmatpush1.msra.mxu0 %v36
    %129 = vmatprep.subr.mxu0 %v35
    %130 = vmatpush1.msra.mxu0 %v34
    %131 = vmatprep.subr.mxu0 %v33
    %132 = vmatpush1.msra.mxu0 %v32
    %133 = vmatprep.subr.mxu0 %v31
    %134 = vmatpush1.msra.mxu0 %v30
    %135 = vmatprep.subr.mxu0 0.0
    %136 = vmatpush2.msra.mxu0 0.0
    %137 = vmatprep.subr.mxu0 0.0
    %138 = vmatpush2.msra.mxu0 0.0
    %139 = vmatprep.subr.mxu0 0.0
    %140 = vmatpush2.msra.mxu0 0.0
    %141 = vmatprep.subr.mxu0 0.0
    %142 = vmatpush2.msra.mxu0 0.0
    %143 = vmatprep.subr.mxu0 0.0
    %144 = vmatpush2.msra.mxu0 0.0
    %145 = vmatprep.subr.mxu0 0.0
    %146 = vmatpush2.msra.mxu0 0.0
    %147 = vmatprep.subr.mxu0 0.0
    %148 = vmatpush2.msra.mxu0 0.0
    %149 = vmatprep.subr.mxu0 %v101
    %150 = vmatpush2.msra.mxu0 %v98
    %151 = vmatprep.subr.mxu0 %v77
    %152 = vmatpush2.msra.mxu0 %v76
    %153 = vmatprep.subr.mxu0 %v75
    %154 = vmatpush2.msra.mxu0 %v74
    %155 = vmatprep.subr.mxu0 %v73
    %156 = vmatpush2.msra.mxu0 %v72
    %157 = vmatprep.subr.mxu0 %v71
    %158 = vmatpush2.msra.mxu0 %v70
    %159 = vmatprep.subr.mxu0 %v69
    %160 = vmatpush2.msra.mxu0 %v68
    %161 = vmatprep.subr.mxu0 %v67
    %162 = vmatpush2.msra.mxu0 %v66
    %163 = vmatprep.subr.mxu0 %v65
    %164 = vmatpush2.msra.mxu0 %v64
    %165 = vmatprep.subr.mxu0 %v63
    %166 = vmatpush2.msra.mxu0 %v62
    %167 = vmatprep.mubr.f32.mxu0 %v94
    %168 = vmatmul.mubr.f32.gmra.mxu0 %v28
    %v169 = vpop.f32.mrf.mxu0
    %v170 = vadd.f32 %v85, %v169
    %v171 = vpop.f32.mrf.mxu0
    %v172 = vadd.f32 %v89, %v171
    %173 = vdwg.mxu0
    %174 = vst [vmem:[%s3] sm:$0xff] %v170
    %175 = vst [vmem:[%s3 + $0x8] sm:$0xff] %v172
    // Predicated region
    $region18: #{forward.1} parent=1 // pred_check
      _
    $region19: #{forward.1} parent=1 // pred_check_branch
      %177 = sbr.rel (0) target = $region21
    $region20: #{forward.1} parent=1 // pred_region
      _
    $region21: #{forward.1} parent=1 // pred_fallthru
      _
    // Predicated region
    $region22: #{forward.1} parent=1 // pred_check
      _
    $region23: #{forward.1} parent=1 // pred_check_branch
      %179 = sbr.rel (0) target = $region25
    $region24: #{forward.1} parent=1 // pred_region
      _
    $region25: #{forward.1} parent=1 // pred_fallthru
      _
    %180 = vsyncpa [#allocation3], 1

</llo_original>
